<compile_context>
chip_gen: v6e
topology: v6e:2x2x1
jax: 0.10.0
libtpu: 0.0.40
codegen_flags: <defaults>
</compile_context>

<pallas_src>
import math
from functools import partial

import jax
import jax.numpy as jnp
from jax import lax
from jax.experimental import pallas as pl
from jax.experimental.pallas import tpu as pltpu

_LANE = 128
_INV_SQRT2 = 1.0 / math.sqrt(2.0)
_TANH_C = math.sqrt(2.0 / math.pi)


def _round_up(x, m):
    return -(-x // m) * m


def _cdiv(a, b):
    return -(-a // b)


def _gelu(y, approximate):
    if approximate:
        # torch.nn.GELU(approximate='tanh') — EUP tanh instead of VPU erf poly.
        return 0.5 * y * (1.0 + jnp.tanh(_TANH_C * (y + 0.044715 * y * y * y)))
    # exact GELU (matches torch.nn.GELU() default, approximate='none')
    return 0.5 * y * (1.0 + lax.erf(y * _INV_SQRT2))


# ---------------------------------------------------------------------------
# kernels
# ---------------------------------------------------------------------------
def _linear_kernel_direct(x_ref, w_ref, b_ref, o_ref, *, use_gelu, approximate):
    """kt == 1 path: whole C_in per step, no accumulator scratch.

    x_ref: (C_in, ts)  w_ref: (tn, C_in)  b_ref: (tn, 1)  o_ref: (tn, ts)
    """
    y = jnp.dot(w_ref[...], x_ref[...], preferred_element_type=jnp.float32)
    y = y + b_ref[...].astype(jnp.float32)
    if use_gelu:
        y = _gelu(y, approximate)
    o_ref[...] = y.astype(o_ref.dtype)


def _linear_kernel_ktiled(x_ref, w_ref, b_ref, o_ref, acc_ref, *,
                          use_gelu, approximate):
    """kt > 1 path: C_in tiled, f32 accumulator resident across the k axis.

    x_ref: (tk, ts)  w_ref: (tn, tk)  b_ref: (tn, 1)
    o_ref: (tn, ts)  acc_ref: (tn, ts) f32
    """
    k = pl.program_id(3)

    @pl.when(k == 0)
    def _():
        acc_ref[...] = jnp.zeros_like(acc_ref)

    acc_ref[...] += jnp.dot(w_ref[...], x_ref[...],
                            preferred_element_type=jnp.float32)

    @pl.when(k == pl.num_programs(3) - 1)
    def _():
        y = acc_ref[...] + b_ref[...].astype(jnp.float32)
        if use_gelu:
            y = _gelu(y, approximate)
        o_ref[...] = y.astype(o_ref.dtype)


# ---------------------------------------------------------------------------
# tiling policy
# ---------------------------------------------------------------------------
def _vmem_budget():
    """Generation-aware VMEM budget/limit (v5e/v6e: 128 MiB, v7x: 64 MiB)."""
    try:
        cap = int(pltpu.get_tpu_info().vmem_capacity_bytes)
    except Exception:
        cap = 64 * 1024 * 1024              # conservative fallback (v7x VMEM)
    budget = int(cap * 0.60)                # our (double-buffered) blocks
    limit = min(cap - 8 * 1024 * 1024, int(cap * 0.875))
    return budget, limit


def _footprint(tk, tn, kt, ts, in_isz, out_isz):
    # TODO(synk): single-buffer the weight (pipeline_mode=pl.Buffered(1)) when
    # its block index is constant (kt == 1) to reclaim one weight buffer.
    fixed = 2 * tn * tk * in_isz + 2 * tn * 4          # weight + bias (x2 bufs)
    per_col = 2 * tk * in_isz + 2 * tn * out_isz       # x + out blocks (x2 bufs)
    if kt > 1:
        per_col += 4 * tn                              # f32 accumulator scratch
    return fixed + per_col * ts, fixed, per_col


def _select_tiling(B, C_in, C_out, HW, in_isz, out_isz, budget, limit):
    # K (C_in) tiles: full C_in first (no k-tiling -> no acc scratch, weight
    # slab fetched once per (b, n)), then MXU-aligned exact divisors, largest
    # first.  tk must be a multiple of 128 (weight lane dim) or equal C_in,
    # and must divide C_in exactly (partial reduction blocks would accumulate
    # garbage).
    tk_cands = [C_in] + [c for c in (2048, 1792, 1536, 1280, 1024, 896, 768,
                                     640, 512, 384, 256, 128)
                         if c < C_in and C_in % c == 0]
    # N (C_out) tiles: full C_out first, then multiples of 256 (MXU N).
    # Partial trailing N blocks are safe (garbage rows never written back).
    tn_cands = [C_out] + [c for c in (4096, 2048, 1024, 512, 256) if c < C_out]

    if HW <= _LANE:
        hw_r, ts_hi = HW, HW
    else:
        hw_r = _round_up(HW, _LANE)
        ts_hi = min(hw_r, 8192)             # diminishing returns past ~1k lanes
    ts_min = min(ts_hi, 512)                # >=512-wide stores when possible

    chosen = None
    for tk in tk_cands:                     # prefer kt == 1
        kt = _cdiv(C_in, tk)
        for tn in tn_cands:                 # prefer full C_out
            _, fixed, per_col = _footprint(tk, tn, kt, 0, in_isz, out_isz)
            if budget <= fixed:
                continue
            ts_fit = (budget - fixed) // per_col
            if ts_fit >= ts_min:
                chosen = (tk, kt, tn, ts_fit)
                break
        if chosen is not None:
            break
    if chosen is None:                      # smallest tiles, take what fits
        tk, tn = tk_cands[-1], tn_cands[-1]
        kt = _cdiv(C_in, tk)
        _, fixed, per_col = _footprint(tk, tn, kt, 0, in_isz, out_isz)
        ts_fit = (budget - fixed) // per_col if budget > fixed else 0
        chosen = (tk, kt, tn, max(min(HW, _LANE), ts_fit))

    tk, kt, tn, ts_fit = chosen
    nt = _cdiv(C_out, tn)

    # Balanced spatial tiles (avoid an almost-all-padding trailing tile).
    if HW <= _LANE:
        ts, st = HW, 1
    else:
        ts_cap = max(_LANE, (min(ts_fit, ts_hi) // _LANE) * _LANE)
        if ts_cap >= HW:
            ts, st = HW, 1
        else:
            st0 = _cdiv(hw_r, ts_cap)
            ts = _round_up(_cdiv(hw_r, st0), _LANE)
            st = _cdiv(HW, ts)

    # v7x has 2 TensorCores and only 'parallel' grid steps shard across them:
    # guarantee >= 2 parallel steps (costs ~0.35us extra on 1-core chips).
    if B * nt * st < 2 and HW >= 2 * _LANE:
        ts = _round_up(_cdiv(_round_up(HW, _LANE), 2), _LANE)
        st = _cdiv(HW, ts)

    total, _, _ = _footprint(tk, tn, kt, ts, in_isz, out_isz)
    if total > limit:
        raise ValueError(
            f"channel-linear tiling does not fit VMEM: need {total} bytes "
            f"(tk={tk}, tn={tn}, ts={ts}) > limit {limit} bytes")
    return tk, kt, tn, nt, ts, st


# ---------------------------------------------------------------------------
# wrapper
# ---------------------------------------------------------------------------
def pallas_channel_linear(x_nchw, weight, bias=None, use_gelu=False,
                          gelu_approximate=False, compute_dtype=None,
                          block_sizes=None):
    """Permute(0,2,3,1) -> nn.Linear -> [GELU] -> Permute(0,3,1,2), fused.

    x_nchw : (B, C_in, H, W)
    weight : (C_out, C_in)   PyTorch nn.Linear layout (used as-is)
    bias   : (C_out,) or None
    compute_dtype : e.g. jnp.bfloat16 to halve HBM traffic / hit the bf16 MXU
                    rate (accumulation & epilogue remain f32); default: keep
                    the input dtype (exact torch-f32 semantics).
    block_sizes   : optional (tk, tn, ts) override for testing / tuning.
    returns: (B, C_out, H, W) in x's original dtype.
    """
    B, C_in, H, W = x_nchw.shape
    C_out, c_in_w = weight.shape
    assert c_in_w == C_in, "weight/input channel mismatch"
    out_dtype = x_nchw.dtype
    if bias is None:
        bias = jnp.zeros((C_out,), dtype=weight.dtype)
    if compute_dtype is not None:
        x_nchw = x_nchw.astype(compute_dtype)
        weight = weight.astype(compute_dtype)

    HW = H * W
    in_isz = jnp.dtype(x_nchw.dtype).itemsize
    out_isz = jnp.dtype(out_dtype).itemsize

    budget, vmem_limit = _vmem_budget()
    if block_sizes is None:
        tk, kt, tn, nt, ts, st = _select_tiling(
            B, C_in, C_out, HW, in_isz, out_isz, budget, vmem_limit)
    else:
        tk, tn, ts = block_sizes
        assert C_in % tk == 0, "tk must divide C_in exactly"
        kt, nt, st = C_in // tk, _cdiv(C_out, tn), _cdiv(HW, ts)

    # (B, C_in, H, W) -> (B, C_in, H*W): free reshape of a contiguous array.
    # No jnp.pad / output slice: boundary tiles use Pallas partial-block
    # masking (padded lanes/rows only feed output elements never written back).
    x3d = x_nchw.reshape(B, C_in, HW)
    b2d = bias.reshape(C_out, 1)

    if kt == 1:
        # Spatial innermost: the (tn, C_in) weight slab's block index is
        # constant across spatial steps, so it is fetched once per (b, n)
        # instead of once per spatial tile.  No accumulator scratch needed.
        grid = (B, nt, st)
        kernel = partial(_linear_kernel_direct, use_gelu=use_gelu,
                         approximate=gelu_approximate)
        in_specs = [
            pl.BlockSpec((None, C_in, ts), lambda b, n, s: (b, 0, s)),
            pl.BlockSpec((tn, C_in), lambda b, n, s: (n, 0)),
            pl.BlockSpec((tn, 1), lambda b, n, s: (n, 0)),
        ]
        out_specs = pl.BlockSpec((None, tn, ts), lambda b, n, s: (b, n, s))
        scratch = []
        semantics = ("parallel", "parallel", "parallel")
    else:
        # TODO(synk): for very large weights a weight-stationary variant
        # (weight slab resident in VMEM scratch + pltpu.emit_pipeline over x)
        # would avoid re-streaming the weight once per spatial tile.
        grid = (B, nt, st, kt)              # reduction (C_in) axis last
        kernel = partial(_linear_kernel_ktiled, use_gelu=use_gelu,
                         approximate=gelu_approximate)
        in_specs = [
            pl.BlockSpec((None, tk, ts), lambda b, n, s, k: (b, k, s)),
            pl.BlockSpec((tn, tk), lambda b, n, s, k: (n, k)),
            pl.BlockSpec((tn, 1), lambda b, n, s, k: (n, 0)),
        ]
        out_specs = pl.BlockSpec((None, tn, ts), lambda b, n, s, k: (b, n, s))
        scratch = [pltpu.VMEM((tn, ts), jnp.float32)]
        semantics = ("parallel", "parallel", "parallel", "arbitrary")

    out3d = pl.pallas_call(
        kernel,
        out_shape=jax.ShapeDtypeStruct((B, C_out, HW), out_dtype),
        grid_spec=pltpu.PrefetchScalarGridSpec(
            num_scalar_prefetch=0,
            grid=grid,
            in_specs=in_specs,
            out_specs=out_specs,
            scratch_shapes=scratch,
        ),
        compiler_params=pltpu.CompilerParams(
            dimension_semantics=semantics,
            vmem_limit_bytes=vmem_limit,
        ),
    )(x3d, weight, b2d)

    return out3d.reshape(B, C_out, H, W)


if __name__ == "__main__":
    # ---- test 1: small shape, kt == 1 direct path, exact-erf GELU ----------
    key = jax.random.PRNGKey(0)
    B, C_in, H, W = 2, 4, 16, 16
    C_out = 8
    kx, kw, kb = jax.random.split(key, 3)
    x = jax.random.normal(kx, (B, C_in, H, W), dtype=jnp.float32)
    bound = 1.0 / math.sqrt(C_in)
    weight = jax.random.uniform(kw, (C_out, C_in), jnp.float32, -bound, bound)
    bias = jax.random.uniform(kb, (C_out,), jnp.float32, -bound, bound)

    out = pallas_channel_linear(x, weight, bias, use_gelu=True)
    jax.block_until_ready(out)

    ref = jnp.einsum("bchw,oc->bohw", x, weight) + bias[None, :, None, None]
    ref = 0.5 * ref * (1.0 + lax.erf(ref * _INV_SQRT2))
    assert out.shape == (B, C_out, H, W)
    assert jnp.allclose(out, ref, atol=1e-5), "mismatch vs reference (direct)"

    # ---- test 2: forced k/n/spatial tiling (acc kernel, partial tiles) -----
    B2, C_in2, H2, W2, C_out2 = 1, 256, 16, 12, 16
    k2x, k2w, k2b = jax.random.split(jax.random.PRNGKey(1), 3)
    x2 = jax.random.normal(k2x, (B2, C_in2, H2, W2), dtype=jnp.float32)
    bound2 = 1.0 / math.sqrt(C_in2)
    w2 = jax.random.uniform(k2w, (C_out2, C_in2), jnp.float32, -bound2, bound2)
    b2 = jax.random.uniform(k2b, (C_out2,), jnp.float32, -bound2, bound2)

    out2 = pallas_channel_linear(x2, w2, b2, use_gelu=False,
                                 block_sizes=(128, 8, 128))  # kt=2, nt=2, st=2
    jax.block_until_ready(out2)

    ref2 = jnp.einsum("bchw,oc->bohw", x2, w2) + b2[None, :, None, None]
    assert out2.shape == (B2, C_out2, H2, W2)
    # looser tolerance: the XLA einsum reference may pick a different default
    # f32-matmul precision than the in-kernel MXU dot
    assert jnp.allclose(out2, ref2, atol=1e-2, rtol=1e-2), \
        "mismatch vs reference (k-tiled)"

    print("KERNEL_OK")
</pallas_src>

<mosaic_0001>
module attributes {stable_mosaic.version = 11 : i64} {
  func.func @_linear_kernel_direct(%arg0: i32, %arg1: i32, %arg2: i32, %arg3: memref<1x4x256xf32, #tpu.memory_space<vmem>>, %arg4: memref<8x4xf32, #tpu.memory_space<vmem>>, %arg5: memref<8x1xf32, #tpu.memory_space<vmem>>, %arg6: memref<1x8x256xf32, #tpu.memory_space<vmem>>) attributes {dimension_semantics = [#tpu.dimension_semantics<parallel>, #tpu.dimension_semantics<parallel>, #tpu.dimension_semantics<parallel>], iteration_bounds = array<i64: 2, 1, 1>, scalar_prefetch = 0 : i64, scratch_operands = 0 : i64, tpu.core_type = #tpu.core_type<tc>, window_params = [{transform_indices = @transform_0, window_bounds = array<i64: 1, 4, 256>}, {transform_indices = @transform_1, window_bounds = array<i64: 8, 4>}, {transform_indices = @transform_2, window_bounds = array<i64: 8, 1>}, {transform_indices = @transform_3, window_bounds = array<i64: 1, 8, 256>}]} {
    %c0 = arith.constant 0 : index
    %c0_0 = arith.constant 0 : index
    %0 = vector.load %arg4[%c0, %c0_0] : memref<8x4xf32, #tpu.memory_space<vmem>>, vector<8x4xf32>
    %c0_1 = arith.constant 0 : index
    %c0_2 = arith.constant 0 : index
    %c0_3 = arith.constant 0 : index
    %1 = vector.load %arg3[%c0_1, %c0_2, %c0_3] : memref<1x4x256xf32, #tpu.memory_space<vmem>>, vector<1x4x256xf32>
    %2 = vector.shape_cast %1 : vector<1x4x256xf32> to vector<4x256xf32>
    %cst = arith.constant dense<0.000000e+00> : vector<8x256xf32>
    %3 = tpu.matmul %0, %2, %cst {dimension_numbers = #tpu.dot_dimension_numbers<[1], [0], [0], [1], [0, 0, 1, 1], [], []>} : vector<8x4xf32>, vector<4x256xf32>, vector<8x256xf32> -> vector<8x256xf32>
    %c0_4 = arith.constant 0 : index
    %c0_5 = arith.constant 0 : index
    %4 = vector.load %arg5[%c0_4, %c0_5] : memref<8x1xf32, #tpu.memory_space<vmem>>, vector<8x1xf32>
    %5 = vector.broadcast %4 : vector<8x1xf32> to vector<8x256xf32>
    %6 = arith.addf %3, %5 : vector<8x256xf32>
    %cst_6 = arith.constant 5.000000e-01 : f32
    %7 = vector.broadcast %cst_6 : f32 to vector<8x256xf32>
    %8 = arith.mulf %7, %6 : vector<8x256xf32>
    %cst_7 = arith.constant 0.707106769 : f32
    %9 = vector.broadcast %cst_7 : f32 to vector<8x256xf32>
    %10 = arith.mulf %6, %9 : vector<8x256xf32>
    %11 = math.erf %10 : vector<8x256xf32>
    %cst_8 = arith.constant 1.000000e+00 : f32
    %12 = vector.broadcast %cst_8 : f32 to vector<8x256xf32>
    %13 = arith.addf %12, %11 : vector<8x256xf32>
    %14 = arith.mulf %8, %13 : vector<8x256xf32>
    %c0_9 = arith.constant 0 : index
    %c0_10 = arith.constant 0 : index
    %c0_11 = arith.constant 0 : index
    %15 = vector.load %arg6[%c0_9, %c0_10, %c0_11] : memref<1x8x256xf32, #tpu.memory_space<vmem>>, vector<1x8x256xf32>
    %16 = vector.shape_cast %15 : vector<1x8x256xf32> to vector<8x256xf32>
    %17 = vector.shape_cast %14 : vector<8x256xf32> to vector<1x8x256xf32>
    tpu.vector_store %arg6[%c0_9, %c0_10, %c0_11], %17 {strides = array<i32>} : memref<1x8x256xf32, #tpu.memory_space<vmem>>, vector<1x8x256xf32>,
    return
  }
  func.func @transform_0(%arg0: i32, %arg1: i32, %arg2: i32) -> (i32, i32, i32) {
    %c0_i32 = arith.constant 0 : i32
    %c0_i32_0 = arith.constant 0 : i32
    return %arg0, %c0_i32, %arg2 : i32, i32, i32
  }
  func.func @transform_1(%arg0: i32, %arg1: i32, %arg2: i32) -> (i32, i32) {
    %c0_i32 = arith.constant 0 : i32
    %c0_i32_0 = arith.constant 0 : i32
    return %arg1, %c0_i32 : i32, i32
  }
  func.func @transform_2(%arg0: i32, %arg1: i32, %arg2: i32) -> (i32, i32) {
    %c0_i32 = arith.constant 0 : i32
    %c0_i32_0 = arith.constant 0 : i32
    return %arg1, %c0_i32 : i32, i32
  }
  func.func @transform_3(%arg0: i32, %arg1: i32, %arg2: i32) -> (i32, i32, i32) {
    %c0_i32 = arith.constant 0 : i32
    return %arg0, %arg1, %arg2 : i32, i32, i32
  }
}

</mosaic_0001>

<llo_original>
// kernel: tpu_custom_call.1
$region0: #{tpu_custom_call.1}
  #allocation0 [shape = 'u32[]', space=smem, size = 0x4, offset = 0x4, fixed_abs, tag = 'smem constant byte address 0x4 - core index']
  #allocation1 [shape = 'u32[144,128]{1,0:T(1,128)}', space=vmem, size = 0x12000, scoped, tag = 'internal scratch']
  %s0 = inlined_call_operand.vmem [shape: f32[2,4,256], index: 0, kind: input, shape index: {}]
  %s1 = inlined_call_operand.vmem [shape: f32[8,4], index: 1, kind: input, shape index: {}]
  %s2 = inlined_call_operand.vmem [shape: f32[8,1], index: 2, kind: input, shape index: {}]
  %s3 = inlined_call_operand.hbm [shape: f32[2,8,256], index: 3, kind: output, shape index: {}]
  %s4 = sld [smem:[#allocation0]]
  $region45: #{tpu_custom_call.1} parent=0
    _
  %s6 = ssub.s32 1, %s4
  %s7 = scalar_select 0, %s6, %s4
  $region1: #{tpu_custom_call.1} parent=0
    #allocation2 [shape = 'u8[16384]{0}', space=vmem, size = 0x4000, scoped, tag = 'output window, operand 0']
    #allocation3 [shape = 's32[2]{0}', space=sflag, size = 0x8, scoped, tag = 'scoped memory for tpu_custom_call.1']
    %8 = vsyncpa [#allocation3], 0
    %s9 = scalar_lea.sflag [#allocation3], 1
    %10 = vsyncpa %s9, 0
    loop: start=0, step=1, limit=4
    $region2: #{tpu_custom_call.1} parent=1 // loop_pre_header
      _
    $region3: #{tpu_custom_call.1} parent=1 // loop_header
      %s12 = sphi 0, %s16
      %p13 = scmp.ge.s32.totalorder %s12, 4
      %s19 = sphi 0, %s38
      %s20 = sphi 0, %s34
      %s21 = sphi 0, %s30
      %s22 = sphi 0, %s19
      %s23 = sphi 0, %s20
      %s24 = sphi 0, %s21
      %s25 = sphi 0, %s22
      %s26 = sphi 0, %s23
      %s27 = sphi 0, %s24
      %s43 = sphi 0, %s45
      %s46 = sphi 0, %s43
      %s47 = sphi 0, %s46
      %s63 = sphi 0, %s47
      %s69 = sphi 0, %s71
      %s72 = sphi 0, %s69
      %s73 = sphi 0, %s72
      %s89 = sphi 0, %s73
      %s95 = sphi 0, %s97
      %s98 = sphi 0, %s95
      %s99 = sphi 0, %s98
      %s115 = sphi 0, %s99
      %s125 = sphi 0, %s127
      %s128 = sphi 0, %s125
      %s129 = sphi 0, %s128
      %s145 = sphi 0, %s129
    $region4: #{tpu_custom_call.1} parent=1 // loop_header_branch
      %15 = sbr.rel (%p13) target = $region8
    $region5: #{tpu_custom_call.1} parent=1 // loop_body
      %s17 = ssub.s32 %s12, 1
      %s18 = ssub.s32 %s12, 2
      %s28 = sadd.s32 1, %s21
      %p29 = scmp.ge.s32.totalorder %s28, 1
      %s30 = scalar_select %p29, 0, %s28
      %s31 = sadd.s32 1, %s20
      %s32 = scalar_select %p29, %s31, %s20
      %p33 = scmp.ge.s32.totalorder %s32, 1
      %s34 = scalar_select %p33, 0, %s32
      %s35 = sadd.s32 1, %s19
      %s36 = scalar_select %p33, %s35, %s19
      %p37 = scmp.ge.s32.totalorder %s36, 2
      %s38 = scalar_select %p37, 0, %s36
      %s39 = ssub.s32 %s19, %s38
      %s40 = ssub.s32 %s21, %s30
      %s41 = sor.u32 %s39, %s40
      %p42 = scmp.eq.s32.totalorder %s41, 0
      %s44 = sadd.s32 %s43, 1
      %s45 = scalar_select %p42, %s43, %s44
      %p48 = pneg %p42
      %p49 = scmp.eq.s32.totalorder %s12, 1
      %p50 = por %p48, %p49
      %p51 = scmp.ne.s32.totalorder %s43, %s46
      %p52 = scmp.eq.s32.totalorder %s12, 0
      %p53 = por %p51, %p52
      %p54 = scmp.ne.s32.totalorder %s43, %s46
      %p55 = scmp.eq.s32.totalorder %s17, 1
      %p56 = por %p54, %p55
      %p57 = scmp.ne.s32.totalorder %s46, %s47
      %p58 = scmp.eq.s32.totalorder %s17, 0
      %p59 = por %p57, %p58
      %p60 = scmp.ne.s32.totalorder %s46, %s47
      %p61 = scmp.eq.s32.totalorder %s18, 1
      %p62 = por %p60, %p61
      %p64 = scmp.ne.s32.totalorder %s47, %s63
      %p65 = scmp.eq.s32.totalorder %s18, 0
      %p66 = por %p64, %p65
      %s67 = ssub.s32 %s20, %s34
      %p68 = scmp.eq.s32.totalorder %s67, 0
      %s70 = sadd.s32 %s69, 1
      %s71 = scalar_select %p68, %s69, %s70
      %p74 = pneg %p68
      %p75 = scmp.eq.s32.totalorder %s12, 1
      %p76 = por %p74, %p75
      %p77 = scmp.ne.s32.totalorder %s69, %s72
      %p78 = scmp.eq.s32.totalorder %s12, 0
      %p79 = por %p77, %p78
      %p80 = scmp.ne.s32.totalorder %s69, %s72
      %p81 = scmp.eq.s32.totalorder %s17, 1
      %p82 = por %p80, %p81
      %p83 = scmp.ne.s32.totalorder %s72, %s73
      %p84 = scmp.eq.s32.totalorder %s17, 0
      %p85 = por %p83, %p84
      %p86 = scmp.ne.s32.totalorder %s72, %s73
      %p87 = scmp.eq.s32.totalorder %s18, 1
      %p88 = por %p86, %p87
      %p90 = scmp.ne.s32.totalorder %s73, %s89
      %p91 = scmp.eq.s32.totalorder %s18, 0
      %p92 = por %p90, %p91
      %s93 = ssub.s32 %s20, %s34
      %p94 = scmp.eq.s32.totalorder %s93, 0
      %s96 = sadd.s32 %s95, 1
      %s97 = scalar_select %p94, %s95, %s96
      %p100 = pneg %p94
      %p101 = scmp.eq.s32.totalorder %s12, 1
      %p102 = por %p100, %p101
      %p103 = scmp.ne.s32.totalorder %s95, %s98
      %p104 = scmp.eq.s32.totalorder %s12, 0
      %p105 = por %p103, %p104
      %p106 = scmp.ne.s32.totalorder %s95, %s98
      %p107 = scmp.eq.s32.totalorder %s17, 1
      %p108 = por %p106, %p107
      %p109 = scmp.ne.s32.totalorder %s98, %s99
      %p110 = scmp.eq.s32.totalorder %s17, 0
      %p111 = por %p109, %p110
      %p112 = scmp.ne.s32.totalorder %s98, %s99
      %p113 = scmp.eq.s32.totalorder %s18, 1
      %p114 = por %p112, %p113
      %p116 = scmp.ne.s32.totalorder %s99, %s115
      %p117 = scmp.eq.s32.totalorder %s18, 0
      %p118 = por %p116, %p117
      %s119 = ssub.s32 %s19, %s38
      %s120 = ssub.s32 %s20, %s34
      %s121 = sor.u32 %s119, %s120
      %s122 = ssub.s32 %s21, %s30
      %s123 = sor.u32 %s121, %s122
      %p124 = scmp.eq.s32.totalorder %s123, 0
      %s126 = sadd.s32 %s125, 1
      %s127 = scalar_select %p124, %s125, %s126
      %p130 = pneg %p124
      %p131 = scmp.eq.s32.totalorder %s12, 1
      %p132 = por %p130, %p131
      %p133 = scmp.ne.s32.totalorder %s125, %s128
      %p134 = scmp.eq.s32.totalorder %s12, 0
      %p135 = por %p133, %p134
      %p136 = scmp.ne.s32.totalorder %s125, %s128
      %p137 = scmp.eq.s32.totalorder %s17, 1
      %p138 = por %p136, %p137
      %p139 = scmp.ne.s32.totalorder %s128, %s129
      %p140 = scmp.eq.s32.totalorder %s17, 0
      %p141 = por %p139, %p140
      %p142 = scmp.ne.s32.totalorder %s128, %s129
      %p143 = scmp.eq.s32.totalorder %s18, 1
      %p144 = por %p142, %p143
      %p146 = scmp.ne.s32.totalorder %s129, %s145
      %p147 = scmp.eq.s32.totalorder %s18, 0
      %p148 = por %p146, %p147
      %p149 = scmp.le.s32.totalorder 1, %s12
      %p150 = scmp.lt.s32.totalorder %s12, 3
      %p151 = pnand %p149, %p150
      %p152 = pneg %p151
      // Predicated region
      $region9: #{tpu_custom_call.1} parent=5 // pred_check
        _
      $region10: #{tpu_custom_call.1} parent=5 // pred_check_branch
        %154 = sbr.rel (%p151) target = $region12
      $region11: #{tpu_custom_call.1} parent=5 // pred_region
        %s155 = ssub.s32 %s12, 1
        // Predicated region
        $region13: #{tpu_custom_call.1} parent=11 // pred_check
          %p156 = pneg %p85
        $region14: #{tpu_custom_call.1} parent=11 // pred_check_branch
          %158 = sbr.rel (%p156) target = $region16
        $region15: #{tpu_custom_call.1} parent=11 // pred_region
          %p159 = scmp.lt.s32.totalorder %s23, 0
          %s160 = scalar_select %p159, %s23, 0
          %s161 = smul.addr %s160, 8
          %s162 = scalar_lea.vmem %s1, %s161
        $region16: #{tpu_custom_call.1} parent=11 // pred_fallthru
          _
        // Predicated region
        $region17: #{tpu_custom_call.1} parent=11 // pred_check
          %p163 = pneg %p111
        $region18: #{tpu_custom_call.1} parent=11 // pred_check_branch
          %165 = sbr.rel (%p163) target = $region20
        $region19: #{tpu_custom_call.1} parent=11 // pred_region
          %p166 = scmp.lt.s32.totalorder %s23, 0
          %s167 = scalar_select %p166, %s23, 0
          %s168 = smul.addr %s167, 8
          %s169 = scalar_lea.vmem %s2, %s168
        $region20: #{tpu_custom_call.1} parent=11 // pred_fallthru
          _
      $region12: #{tpu_custom_call.1} parent=5 // pred_fallthru
        _
      %p170 = scmp.lt.s32.totalorder %s12, 2
      // Predicated region
      $region21: #{tpu_custom_call.1} parent=5 // pred_check
        %p171 = pneg %p170
      $region22: #{tpu_custom_call.1} parent=5 // pred_check_branch
        %173 = sbr.rel (%p171) target = $region24
      $region23: #{tpu_custom_call.1} parent=5 // pred_region
        // Predicated region
        $region25: #{tpu_custom_call.1} parent=23 // pred_check
          %p174 = pneg %p53
        $region26: #{tpu_custom_call.1} parent=23 // pred_check_branch
          %176 = sbr.rel (%p174) target = $region28
        $region27: #{tpu_custom_call.1} parent=23 // pred_region
          %s177 = smul.u32 2, %s21
          %p178 = scmp.lt.s32.totalorder %s19, 1
          %s179 = scalar_select %p178, %s19, 1
          %p180 = scmp.lt.s32.totalorder %s177, 1
          %s181 = scalar_select %p180, %s177, 1
          %s182 = smul.addr %s179, 2
          %s183 = sadd.s32 %s181, %s182
          %s184 = smul.addr %s183, 4
          %s185 = scalar_lea.vmem %s0, %s184
          %s186 = smul.u32 2, %s21
        $region28: #{tpu_custom_call.1} parent=23 // pred_fallthru
          _
      $region24: #{tpu_custom_call.1} parent=5 // pred_fallthru
        _
      %p187 = scmp.le.s32.totalorder 1, %s12
      %p188 = scmp.lt.s32.totalorder %s12, 3
      %p189 = pnand %p187, %p188
      %p190 = pneg %p189
      // Predicated region
      $region29: #{tpu_custom_call.1} parent=5 // pred_check
        _
      $region30: #{tpu_custom_call.1} parent=5 // pred_check_branch
        %192 = sbr.rel (%p189) target = $region32
      $region31: #{tpu_custom_call.1} parent=5 // pred_region
        %s193 = ssub.s32 %s12, 1
        %s194 = smul.u32 2, %s24
        %p195 = scmp.lt.s32.totalorder %s22, 1
        %s196 = scalar_select %p195, %s22, 1
        %p197 = scmp.lt.s32.totalorder %s194, 1
        %s198 = scalar_select %p197, %s194, 1
        %s199 = smul.addr %s196, 2
        %s200 = sadd.s32 %s198, %s199
        %s201 = smul.addr %s200, 4
        %s202 = scalar_lea.vmem %s0, %s201
        %p203 = pneg %p59
        %p204 = pneg %p56
        %p205 = scmp.lt.s32.totalorder %s23, 0
        %s206 = scalar_select %p205, %s23, 0
        %s207 = smul.addr %s206, 8
        %s208 = scalar_lea.vmem %s1, %s207
        %p209 = pneg %p85
        %p210 = pneg %p82
        %p211 = scmp.lt.s32.totalorder %s23, 0
        %s212 = scalar_select %p211, %s23, 0
        %s213 = smul.addr %s212, 8
        %s214 = scalar_lea.vmem %s2, %s213
        %p215 = pneg %p111
        %p216 = pneg %p108
        %p217 = pneg %p141
        %p218 = pneg %p138
        %s219 = sand.u32 %s128, 1
        %s220 = scalar_lea.sflag [#allocation3], %s219
        %s221 = sand.u32 %s128, 1
        %s222 = smul.addr %s221, 16
        %s223 = scalar_lea.vmem [#allocation2], %s222
        %s224 = smul.u32 2, %s24
        %p225 = scmp.lt.s32.totalorder %s22, 1
        %s226 = scalar_select %p225, %s22, 1
        %p227 = scmp.lt.s32.totalorder %s224, 1
        %s228 = scalar_select %p227, %s224, 1
        %s229 = smul.addr %s226, 2
        %s230 = sadd.s32 %s228, %s229
        %s231 = smul.addr %s230, 4
        %s232 = scalar_lea.vmem %s0, %s231
        %s233 = smul.u32 2, %s24
        %p234 = scmp.lt.s32.totalorder %s23, 0
        %s235 = scalar_select %p234, %s23, 0
        %s236 = smul.addr %s235, 8
        %s237 = scalar_lea.vmem %s1, %s236
        %p238 = scmp.lt.s32.totalorder %s23, 0
        %s239 = scalar_select %p238, %s23, 0
        %s240 = smul.addr %s239, 8
        %s241 = scalar_lea.vmem %s2, %s240
        %s242 = smul.u32 2, %s24
        %v243 = vld [vmem:[%s237] sm:$0xff]
        %v244 = vld [vmem:[%s232] sm:$0xff]
        %v245 = vld [vmem:[%s241] sm:$0xff]
        %247 = vset.pattern.permute.xlu0 0
        %248 = vperm.xlu0 %247, %v245
        %v249 = vpop.permute.xlu0 %248
        %v252 = vcombine.high %v244, %v244
        %vm253 = vcmask 31744
        %v255 = vsel %vm253, %v243, 0
        %vm257 = vcmask 1043456
        %v258 = vsel %vm257, %v244, 0
        %v260 = vsel %vm257, %v252, 0
        %262 = vmatprep.subr.mxu0 0.0
        %263 = vmatpush1.msra.mxu0 0.0
        %264 = vmatprep.subr.mxu0 0.0
        %265 = vmatpush1.msra.mxu0 0.0
        %266 = vmatprep.subr.mxu0 0.0
        %267 = vmatpush1.msra.mxu0 0.0
        %268 = vmatprep.subr.mxu0 0.0
        %269 = vmatpush1.msra.mxu0 0.0
        %270 = vmatprep.subr.mxu0 0.0
        %271 = vmatpush1.msra.mxu0 0.0
        %272 = vmatprep.subr.mxu0 0.0
        %273 = vmatpush1.msra.mxu0 0.0
        %274 = vmatprep.subr.mxu0 0.0
        %275 = vmatpush1.msra.mxu0 0.0
        %276 = vmatprep.subr.mxu0 0.0
        %277 = vmatpush1.msra.mxu0 0.0
        %278 = vmatprep.subr.mxu0 0.0
        %279 = vmatpush1.msra.mxu0 0.0
        %280 = vmatprep.subr.mxu0 0.0
        %281 = vmatpush1.msra.mxu0 0.0
        %282 = vmatprep.subr.mxu0 0.0
        %283 = vmatpush1.msra.mxu0 0.0
        %284 = vmatprep.subr.mxu0 0.0
        %285 = vmatpush1.msra.mxu0 0.0
        %286 = vmatprep.subr.mxu0 0.0
        %287 = vmatpush1.msra.mxu0 0.0
        %288 = vmatprep.subr.mxu0 0.0
        %289 = vmatpush1.msra.mxu0 0.0
        %290 = vmatprep.subr.mxu0 0.0
        %291 = vmatpush1.msra.mxu0 0.0
        %292 = vmatprep.subr.mxu0 %v260
        %293 = vmatpush1.msra.mxu0 %v258
        %294 = vmatprep.subr.mxu0 0.0
        %295 = vmatpush2.msra.mxu0 0.0
        %296 = vmatprep.subr.mxu0 0.0
        %297 = vmatpush2.msra.mxu0 0.0
        %298 = vmatprep.subr.mxu0 0.0
        %299 = vmatpush2.msra.mxu0 0.0
        %300 = vmatprep.subr.mxu0 0.0
        %301 = vmatpush2.msra.mxu0 0.0
        %302 = vmatprep.subr.mxu0 0.0
        %303 = vmatpush2.msra.mxu0 0.0
        %304 = vmatprep.subr.mxu0 0.0
        %305 = vmatpush2.msra.mxu0 0.0
        %306 = vmatprep.subr.mxu0 0.0
        %307 = vmatpush2.msra.mxu0 0.0
        %308 = vmatprep.subr.mxu0 0.0
        %309 = vmatpush2.msra.mxu0 0.0
        %310 = vmatprep.subr.mxu0 0.0
        %311 = vmatpush2.msra.mxu0 0.0
        %312 = vmatprep.subr.mxu0 0.0
        %313 = vmatpush2.msra.mxu0 0.0
        %314 = vmatprep.subr.mxu0 0.0
        %315 = vmatpush2.msra.mxu0 0.0
        %316 = vmatprep.subr.mxu0 0.0
        %317 = vmatpush2.msra.mxu0 0.0
        %318 = vmatprep.subr.mxu0 0.0
        %319 = vmatpush2.msra.mxu0 0.0
        %320 = vmatprep.subr.mxu0 0.0
        %321 = vmatpush2.msra.mxu0 0.0
        %322 = vmatprep.subr.mxu0 0.0
        %323 = vmatpush2.msra.mxu0 0.0
        %324 = vmatprep.subr.mxu0 0.0
        %325 = vmatpush2.msra.mxu0 0.0
        %326 = vmatprep.mubr.f32.mxu0 0.0
        %327 = vmatmul.mubr.f32.gmra.mxu0 %v255
        %v328 = vpop.f32.mrf.mxu0
        %v329 = vadd.f32 %v249, %v328
        %v330 = vpop.f32.mrf.mxu0
        %v331 = vadd.f32 %v249, %v330
        %332 = vdwg.mxu0
        %v333 = vmul.f32 %v329, 0.5
        %v334 = vmul.f32 %v331, 0.5
        %v335 = vmul.f32 %v329, 0.70710677
        %v336 = vmul.f32 %v331, 0.70710677
        %v337 = verf.f32.pop %v335
        %v338 = verf.f32.pop %v336
        %v339 = vadd.f32 %v337, 1.0
        %v340 = vadd.f32 %v338, 1.0
        %v341 = vmul.f32 %v333, %v339
        %v342 = vmul.f32 %v334, %v340
        %343 = vst [vmem:[%s223] sm:$0xff] %v341
        %344 = vst [vmem:[%s223 + $0x8] sm:$0xff] %v342
        %s345 = sand.u32 %s128, 1
        %s346 = scalar_lea.sflag [#allocation3], %s345
        %s347 = sand.u32 %s128, 1
        %s348 = smul.addr %s347, 16
        %s349 = scalar_lea.vmem [#allocation2], %s348
        // Predicated region
        $region33: #{tpu_custom_call.1} parent=31 // pred_check
          %p350 = pneg %p138
        $region34: #{tpu_custom_call.1} parent=31 // pred_check_branch
          %352 = sbr.rel (%p350) target = $region36
        $region35: #{tpu_custom_call.1} parent=31 // pred_region
          %s353 = smul.u32 2, %s24
          %s355 = ssub.s32 256, 256
          %356 = vsyncadd %s346, %s355
          %s357 = smul.addr %s23, 2
          %s358 = sadd.s32 %s353, %s357
          %s359 = smul.addr %s22, 2
          %s360 = sadd.s32 %s358, %s359
          %s361 = smul.addr %s360, 128
          %s362 = scalar_lea.hbm %s3, %s361
          %s364 = sshll.u32 %s349, 4
          %s365 = int_to_ptr.vmem [resolvable:$true] %s364
          %367 = dma.vmem_to_hbm [thread:$0]  %s365, 256, %s362, %s346
        $region36: #{tpu_custom_call.1} parent=31 // pred_fallthru
          _
      $region32: #{tpu_custom_call.1} parent=5 // pred_fallthru
        _
      %p368 = scmp.le.s32.totalorder 2, %s12
      // Predicated region
      $region37: #{tpu_custom_call.1} parent=5 // pred_check
        %p369 = pneg %p368
      $region38: #{tpu_custom_call.1} parent=5 // pred_check_branch
        %371 = sbr.rel (%p369) target = $region40
      $region39: #{tpu_custom_call.1} parent=5 // pred_region
        %s372 = ssub.s32 %s12, 2
        // Predicated region
        $region41: #{tpu_custom_call.1} parent=39 // pred_check
          %p373 = pneg %p144
        $region42: #{tpu_custom_call.1} parent=39 // pred_check_branch
          %375 = sbr.rel (%p373) target = $region44
        $region43: #{tpu_custom_call.1} parent=39 // pred_region
          %s376 = sand.u32 %s129, 1
          %s377 = scalar_lea.sflag [#allocation3], %s376
          %s378 = sand.u32 %s129, 1
          %s379 = smul.addr %s378, 16
          %s380 = scalar_lea.vmem [#allocation2], %s379
          %381 = dma.done %s377, 256
        $region44: #{tpu_custom_call.1} parent=39 // pred_fallthru
          _
      $region40: #{tpu_custom_call.1} parent=5 // pred_fallthru
        _
    $region6: #{tpu_custom_call.1} parent=1 // loop_footer
      %s16 = sadd.s32 1, %s12
    $region7: #{tpu_custom_call.1} parent=1 // loop_footer_branch
      %11 = sbr.rel target = $region3
    $region8: #{tpu_custom_call.1} parent=1 // loop_exit
      _
    %382 = vsyncpa [#allocation3], 1
    %s383 = scalar_lea.sflag [#allocation3], 1
    %384 = vsyncpa %s383, 1

</llo_original>
